<compile_context>
chip_gen: v7x
topology: tpu7x:2x2x1
jax: 0.10.0
libtpu: 0.0.40
codegen_flags: <defaults>
</compile_context>

<pallas_src>
import numpy as np
import jax
import jax.numpy as jnp
from jax.experimental import pallas as pl
from jax.experimental.pallas import tpu as pltpu

# Small synthetic shapes consistent with the module's forward
# (PyTorch defaults: E=768, F=100, C=27 -- scaled down, structure identical).
B, S, E = 2, 16, 128          # batch, seq length, embedding dim
F = 64                        # conv filters per kernel size (module default: 100)
KS = (2, 3, 4, 5)             # Kim-CNN kernel heights (consecutive)
C = 27                        # num classes

KMAX = max(KS)
T = S - min(KS) + 1           # 15: unified (maximal) conv output length
T_PAD = 16                    # T padded to a multiple of 8 sublanes
FOUT = len(KS) * F            # 256: all branches packed along lanes
C_PAD = 128                   # class dim padded to a full lane vreg
S_PAD = T_PAD + KMAX - 1      # 20: zero-padded seq so every im2col window is in-bounds
M = B * T_PAD                 # 32: matmul M dim (batch folded in)


def kimcnn_kernel(x2d_ref, w_ref, b_ref, mask_ref, wfc_ref, bfc_ref, o_ref):
    # --- all four conv branches in one deep-K MXU matmul (f32 accumulation).
    acc = jnp.dot(x2d_ref[...], w_ref[...],
                  preferred_element_type=jnp.float32)            # [M, 4F] f32
    acc = jnp.maximum(acc + b_ref[...], 0.0)                      # bias + ReLU

    # --- mask invalid time positions (per-branch conv length + the T padding row).
    # NOTE: zero-masking is only correct because ReLU precedes the max (values >= 0).
    acc3 = acc.reshape(B, T_PAD, FOUT) * mask_ref[...]            # [B, T_PAD, 4F]

    # --- global max-pool over time: one reduction for the whole batch.
    pooled = jnp.max(acc3, axis=1)                                # [B, 4F] f32
    # column order == torch.cat((conv0, conv1, conv2, conv3), dim=1)

    # --- final Linear(4F -> C), bf16 operands (f32 acc), class dim padded to 128 lanes.
    out = jnp.dot(pooled.astype(jnp.bfloat16), wfc_ref[...],
                  preferred_element_type=jnp.float32) + bfc_ref[...]
    o_ref[...] = out.astype(o_ref.dtype)                          # [B, C_PAD]


def pack_params(params):
    """One-time packing (hoisted out of the per-call path).

    Conv weights -> one [KMAX*E, 4F] matrix; rows >= k*E for each branch MUST stay
    exactly zero (bf16 cast preserves exact zeros) so padded sequence rows and
    unused window offsets contribute nothing.  FC weight zero-padded to C_PAD lanes.
    Also builds the static [T_PAD, 4F] validity mask."""
    w_all = jnp.zeros((KMAX * E, FOUT), jnp.float32)
    b_all = jnp.zeros((1, FOUT), jnp.float32)
    for j, k in enumerate(KS):
        w = params[f"w{k}"].reshape(k * E, F)                     # [k*E, F]
        w_all = w_all.at[:k * E, j * F:(j + 1) * F].set(w)
        b_all = b_all.at[:, j * F:(j + 1) * F].set(params[f"b{k}"])
    wfc = jnp.zeros((FOUT, C_PAD), jnp.float32).at[:, :C].set(params["wfc"])
    bfc = jnp.zeros((1, C_PAD), jnp.float32).at[:, :C].set(params["bfc"])

    # Static validity mask: branch j (kernel k = KS[0]+j) owns columns [j*F,(j+1)*F);
    # its valid time positions are t < S - k + 1.  Row T..T_PAD-1 is always invalid.
    t_idx = np.arange(T_PAD)[:, None]
    c_idx = np.arange(FOUT)[None, :]
    k_of_col = KS[0] + c_idx // F
    mask = jnp.asarray((t_idx < (S - k_of_col + 1)).astype(np.float32))  # [T_PAD, 4F]

    return {
        "w_all": w_all.astype(jnp.bfloat16),
        "b_all": b_all,
        "mask": mask,
        "wfc": wfc.astype(jnp.bfloat16),
        "bfc": bfc,
    }


@jax.jit
def kimcnn_forward(x, packed):
    """x: [B, S, E] f32 (stand-in for bert(...).last_hidden_state)."""
    # Wrapper-side im2col: rows ordered (batch, time); lanes ordered
    # (window offset, embedding).  Zero-pad the sequence so every window is
    # in-bounds; cast to bf16 (MXU-native, halves HBM->VMEM bytes).
    x_bf = x.astype(jnp.bfloat16)
    x_pad = jnp.pad(x_bf, ((0, 0), (0, S_PAD - S), (0, 0)))               # [B, S_PAD, E]
    x2d = jnp.concatenate([x_pad[:, i:i + T_PAD, :] for i in range(KMAX)],
                          axis=-1).reshape(M, KMAX * E)                   # [M, KMAX*E]

    out = pl.pallas_call(
        kimcnn_kernel,
        out_shape=jax.ShapeDtypeStruct((B, C_PAD), jnp.float32),
        in_specs=[pl.BlockSpec(memory_space=pltpu.MemorySpace.VMEM)] * 6,
        out_specs=pl.BlockSpec(memory_space=pltpu.MemorySpace.VMEM),
    )(x2d, packed["w_all"], packed["b_all"], packed["mask"],
      packed["wfc"], packed["bfc"])
    return out[:, :C]                                                     # [B, C]


def init_params(key):
    """Deterministic synthetic parameters matching the module's shapes
    (conv weights stored pre-transposed as [k, E, F]; fc as [4F, C])."""
    params = {}
    keys = jax.random.split(key, 2 * len(KS) + 2)
    for n, k in enumerate(KS):
        bound = 1.0 / float(k * E) ** 0.5
        params[f"w{k}"] = jax.random.uniform(keys[2 * n], (k, E, F), jnp.float32,
                                             -bound, bound)
        params[f"b{k}"] = jax.random.uniform(keys[2 * n + 1], (1, F), jnp.float32,
                                             -bound, bound)
    bound = 1.0 / float(len(KS) * F) ** 0.5
    params["wfc"] = jax.random.uniform(keys[-2], (len(KS) * F, C), jnp.float32,
                                       -bound, bound)
    params["bfc"] = jax.random.uniform(keys[-1], (1, C), jnp.float32, -bound, bound)
    return params


def reference(x, params):
    """Pure-JAX f32 reference of the PyTorch forward (eval mode)."""
    feats = []
    for k in KS:
        w, b = params[f"w{k}"], params[f"b{k}"]
        t_len = S - k + 1
        acc = jnp.zeros((B, t_len, F), jnp.float32)
        for i in range(k):
            acc += jnp.einsum("bte,ef->btf", x[:, i:i + t_len, :], w[i])
        acc = jax.nn.relu(acc + b[None, :, :])
        feats.append(jnp.max(acc, axis=1))          # [B, F]
    feat = jnp.concatenate(feats, axis=1)           # [B, 4F]
    return feat @ params["wfc"] + params["bfc"]     # [B, C]


if __name__ == "__main__":
    key = jax.random.PRNGKey(0)
    kx, kp = jax.random.split(key)
    # Stand-in for bert(...).last_hidden_state
    x = jax.random.normal(kx, (B, S, E), jnp.float32)
    params = init_params(kp)

    # Packing done ONCE at init (not in the per-call path).
    packed = pack_params(params)

    out = jax.block_until_ready(kimcnn_forward(x, packed))
    ref = reference(x, params)

    assert out.shape == (B, C), out.shape
    # Tolerance accounts for bf16 conv + bf16 FC operands (f32 accumulation on the
    # MXU) compared against the full-f32 reference.
    assert jnp.allclose(out, ref, atol=5e-2, rtol=5e-2), float(jnp.max(jnp.abs(out - ref)))
    print("KERNEL_OK")
</pallas_src>

<mosaic_0001>
module attributes {stable_mosaic.version = 11 : i64} {
  func.func @kimcnn_kernel(%arg0: memref<32x640xbf16, #tpu.memory_space<vmem>>, %arg1: memref<640x256xbf16, #tpu.memory_space<vmem>>, %arg2: memref<1x256xf32, #tpu.memory_space<vmem>>, %arg3: memref<16x256xf32, #tpu.memory_space<vmem>>, %arg4: memref<256x128xbf16, #tpu.memory_space<vmem>>, %arg5: memref<1x128xf32, #tpu.memory_space<vmem>>, %arg6: memref<2x128xf32, #tpu.memory_space<vmem>>) attributes {dimension_semantics = [], scalar_prefetch = 0 : i64, scratch_operands = 0 : i64, tpu.core_type = #tpu.core_type<tc>} {
    %c0 = arith.constant 0 : index
    %c0_0 = arith.constant 0 : index
    %0 = vector.load %arg0[%c0, %c0_0] : memref<32x640xbf16, #tpu.memory_space<vmem>>, vector<32x640xbf16>
    %c0_1 = arith.constant 0 : index
    %c0_2 = arith.constant 0 : index
    %1 = vector.load %arg1[%c0_1, %c0_2] : memref<640x256xbf16, #tpu.memory_space<vmem>>, vector<640x256xbf16>
    %cst = arith.constant dense<0.000000e+00> : vector<32x256xf32>
    %2 = tpu.matmul %0, %1, %cst {dimension_numbers = #tpu.dot_dimension_numbers<[1], [0], [0], [1], [0, 0, 1, 1], [], []>} : vector<32x640xbf16>, vector<640x256xbf16>, vector<32x256xf32> -> vector<32x256xf32>
    %c0_3 = arith.constant 0 : index
    %c0_4 = arith.constant 0 : index
    %3 = vector.load %arg2[%c0_3, %c0_4] : memref<1x256xf32, #tpu.memory_space<vmem>>, vector<1x256xf32>
    %4 = vector.broadcast %3 : vector<1x256xf32> to vector<32x256xf32>
    %5 = arith.addf %2, %4 : vector<32x256xf32>
    %cst_5 = arith.constant 0.000000e+00 : f32
    %6 = vector.broadcast %cst_5 : f32 to vector<32x256xf32>
    %7 = arith.maximumf %5, %6 : vector<32x256xf32>
    %8 = vector.shape_cast %7 : vector<32x256xf32> to vector<2x16x256xf32>
    %c0_6 = arith.constant 0 : index
    %c0_7 = arith.constant 0 : index
    %9 = vector.load %arg3[%c0_6, %c0_7] : memref<16x256xf32, #tpu.memory_space<vmem>>, vector<16x256xf32>
    %10 = vector.shape_cast %9 : vector<16x256xf32> to vector<1x16x256xf32>
    %11 = vector.broadcast %10 : vector<1x16x256xf32> to vector<2x16x256xf32>
    %12 = arith.mulf %8, %11 : vector<2x16x256xf32>
    %cst_8 = arith.constant dense<0xFF800000> : vector<2x256xf32>
    %13 = vector.multi_reduction <maximumf>, %12, %cst_8 [1] : vector<2x16x256xf32> to vector<2x256xf32>
    %14 = arith.truncf %13 : vector<2x256xf32> to vector<2x256xbf16>
    %c0_9 = arith.constant 0 : index
    %c0_10 = arith.constant 0 : index
    %15 = vector.load %arg4[%c0_9, %c0_10] : memref<256x128xbf16, #tpu.memory_space<vmem>>, vector<256x128xbf16>
    %cst_11 = arith.constant dense<0.000000e+00> : vector<2x128xf32>
    %16 = tpu.matmul %14, %15, %cst_11 {dimension_numbers = #tpu.dot_dimension_numbers<[1], [0], [0], [1], [0, 0, 1, 1], [], []>} : vector<2x256xbf16>, vector<256x128xbf16>, vector<2x128xf32> -> vector<2x128xf32>
    %c0_12 = arith.constant 0 : index
    %c0_13 = arith.constant 0 : index
    %17 = vector.load %arg5[%c0_12, %c0_13] : memref<1x128xf32, #tpu.memory_space<vmem>>, vector<1x128xf32>
    %18 = vector.broadcast %17 : vector<1x128xf32> to vector<2x128xf32>
    %19 = arith.addf %16, %18 : vector<2x128xf32>
    %c0_14 = arith.constant 0 : index
    %c0_15 = arith.constant 0 : index
    %20 = vector.load %arg6[%c0_14, %c0_15] : memref<2x128xf32, #tpu.memory_space<vmem>>, vector<2x128xf32>
    tpu.vector_store %arg6[%c0_14, %c0_15], %19 {strides = array<i32>} : memref<2x128xf32, #tpu.memory_space<vmem>>, vector<2x128xf32>,
    return
  }
}

</mosaic_0001>

<llo_original>
// kernel: kimcnn_forward.1
$region0: #{kimcnn_forward.1}
  #allocation0 [shape = 'u32[]', space=smem, size = 0x4, offset = 0x4, fixed_abs, tag = 'smem constant byte address 0x4 - core index']
  #allocation1 [shape = 'u32[144,128]{1,0:T(1,128)}', space=vmem, size = 0x12000, scoped, tag = 'internal scratch']
  %s0 = inlined_call_operand.vmem [shape: bf16[32,640], index: 0, kind: input, shape index: {}]
  %s1 = inlined_call_operand.hbm [shape: bf16[640,256], index: 1, kind: input, shape index: {}]
  %s2 = inlined_call_operand.vmem [shape: f32[1,256], index: 2, kind: input, shape index: {}]
  %s3 = inlined_call_operand.vmem [shape: f32[16,256], index: 3, kind: input, shape index: {}]
  %s4 = inlined_call_operand.vmem [shape: bf16[256,128], index: 4, kind: input, shape index: {}]
  %s5 = inlined_call_operand.vmem [shape: f32[1,128], index: 5, kind: input, shape index: {}]
  %s6 = inlined_call_operand.hbm [shape: f32[2,128], index: 6, kind: output, shape index: {}]
  %s7 = sld [smem:[#allocation0]]
  $region38: #{kimcnn_forward.1} parent=0
    _
  %s9 = ssub.s32 1, %s7
  %s10 = scalar_select 0, %s9, %s7
  $region1: #{kimcnn_forward.1} parent=0
    #allocation2 [shape = 'u8[327680]{0}', space=vmem, size = 0x50000, scoped, tag = 'input window, operand 1, single buffered']
    #allocation3 [shape = 's32[1]{0}', space=sflag, size = 0x4, scoped, tag = 'scoped memory for kimcnn_forward.1']
    #allocation4 [shape = 's32[1]{0}', space=sflag, size = 0x4, scoped, tag = 'scoped memory for kimcnn_forward.1']
    #allocation5 [shape = 'u8[1024]{0}', space=vmem, size = 0x400, scoped, tag = 'output window, operand 0, single buffered']
    %11 = vsyncpa [#allocation3], 0
    %12 = vsyncpa [#allocation4], 0
    // Predicated region
    $region2: #{kimcnn_forward.1} parent=1 // pred_check
      _
    $region3: #{kimcnn_forward.1} parent=1 // pred_check_branch
      %14 = sbr.rel (0) target = $region5
    $region4: #{kimcnn_forward.1} parent=1 // pred_region
      _
    $region5: #{kimcnn_forward.1} parent=1 // pred_fallthru
      _
    // Predicated region
    $region6: #{kimcnn_forward.1} parent=1 // pred_check
      _
    $region7: #{kimcnn_forward.1} parent=1 // pred_check_branch
      %16 = sbr.rel (0) target = $region9
    $region8: #{kimcnn_forward.1} parent=1 // pred_region
      %s18 = ssub.s32 10240, 10240
      %19 = vsyncadd [#allocation3], %s18
      %s20 = sshll.u32 [#allocation2], 4
      %s21 = int_to_ptr.vmem [resolvable:$true] %s20
      %26 = dma.hbm_to_vmem [thread:$0]  %s1, 10240, %s21, [#allocation3], 128, 128, 8
    $region9: #{kimcnn_forward.1} parent=1 // pred_fallthru
      _
    // Predicated region
    $region10: #{kimcnn_forward.1} parent=1 // pred_check
      _
    $region11: #{kimcnn_forward.1} parent=1 // pred_check_branch
      %28 = sbr.rel (0) target = $region13
    $region12: #{kimcnn_forward.1} parent=1 // pred_region
      _
    $region13: #{kimcnn_forward.1} parent=1 // pred_fallthru
      _
    // Predicated region
    $region14: #{kimcnn_forward.1} parent=1 // pred_check
      _
    $region15: #{kimcnn_forward.1} parent=1 // pred_check_branch
      %30 = sbr.rel (0) target = $region17
    $region16: #{kimcnn_forward.1} parent=1 // pred_region
      _
    $region17: #{kimcnn_forward.1} parent=1 // pred_fallthru
      _
    // Predicated region
    $region18: #{kimcnn_forward.1} parent=1 // pred_check
      _
    $region19: #{kimcnn_forward.1} parent=1 // pred_check_branch
      %32 = sbr.rel (0) target = $region21
    $region20: #{kimcnn_forward.1} parent=1 // pred_region
      _
    $region21: #{kimcnn_forward.1} parent=1 // pred_fallthru
      _
    // Predicated region
    $region22: #{kimcnn_forward.1} parent=1 // pred_check
      _
    $region23: #{kimcnn_forward.1} parent=1 // pred_check_branch
      %34 = sbr.rel (0) target = $region25
    $region24: #{kimcnn_forward.1} parent=1 // pred_region
      _
    $region25: #{kimcnn_forward.1} parent=1 // pred_fallthru
      _
    // Predicated region
    $region26: #{kimcnn_forward.1} parent=1 // pred_check
      _
    $region27: #{kimcnn_forward.1} parent=1 // pred_check_branch
      %36 = sbr.rel (0) target = $region29
    $region28: #{kimcnn_forward.1} parent=1 // pred_region
      %37 = dma.done [#allocation3], 10240
    $region29: #{kimcnn_forward.1} parent=1 // pred_fallthru
      _
    %v39 = vld [vmem:[%s0] sm:$0xff]
    %v40 = vld [vmem:[%s0 + $0x8] sm:$0xff]
    %v41 = vld [vmem:[%s0 + $0x10] sm:$0xf]
    %v42 = vld [vmem:[%s0 + $0x14] sm:$0xff]
    %v43 = vld [vmem:[%s0 + $0x1c] sm:$0xff]
    %v44 = vld [vmem:[%s0 + $0x24] sm:$0xf]
    %v45 = vld [vmem:[%s0 + $0x28] sm:$0xff]
    %v46 = vld [vmem:[%s0 + $0x30] sm:$0xff]
    %v47 = vld [vmem:[%s0 + $0x38] sm:$0xf]
    %v48 = vld [vmem:[%s0 + $0x3c] sm:$0xff]
    %v49 = vld [vmem:[%s0 + $0x44] sm:$0xff]
    %v50 = vld [vmem:[%s0 + $0x4c] sm:$0xf]
    %v51 = vld [vmem:[#allocation2] sm:$0xff]
    %v52 = vld [vmem:[#allocation2 + $0x8] sm:$0xff]
    %v53 = vld [vmem:[#allocation2 + $0x10] sm:$0xff]
    %v54 = vld [vmem:[#allocation2 + $0x18] sm:$0xff]
    %v55 = vld [vmem:[#allocation2 + $0x20] sm:$0xff]
    %v56 = vld [vmem:[#allocation2 + $0x28] sm:$0xff]
    %v57 = vld [vmem:[#allocation2 + $0x30] sm:$0xff]
    %v58 = vld [vmem:[#allocation2 + $0x38] sm:$0xff]
    %v59 = vld [vmem:[#allocation2 + $0x40] sm:$0xff]
    %v60 = vld [vmem:[#allocation2 + $0x48] sm:$0xff]
    %v61 = vld [vmem:[#allocation2 + $0x50] sm:$0xff]
    %v62 = vld [vmem:[#allocation2 + $0x58] sm:$0xff]
    %v63 = vld [vmem:[#allocation2 + $0x60] sm:$0xff]
    %v64 = vld [vmem:[#allocation2 + $0x68] sm:$0xff]
    %v65 = vld [vmem:[#allocation2 + $0x70] sm:$0xff]
    %v66 = vld [vmem:[#allocation2 + $0x78] sm:$0xff]
    %v67 = vld [vmem:[#allocation2 + $0x80] sm:$0xff]
    %v68 = vld [vmem:[#allocation2 + $0x88] sm:$0xff]
    %v69 = vld [vmem:[#allocation2 + $0x90] sm:$0xff]
    %v70 = vld [vmem:[#allocation2 + $0x98] sm:$0xff]
    %v71 = vld [vmem:[#allocation2 + $0xa0] sm:$0xff]
    %v72 = vld [vmem:[#allocation2 + $0xa8] sm:$0xff]
    %v73 = vld [vmem:[#allocation2 + $0xb0] sm:$0xff]
    %v74 = vld [vmem:[#allocation2 + $0xb8] sm:$0xff]
    %v75 = vld [vmem:[#allocation2 + $0xc0] sm:$0xff]
    %v76 = vld [vmem:[#allocation2 + $0xc8] sm:$0xff]
    %v77 = vld [vmem:[#allocation2 + $0xd0] sm:$0xff]
    %v78 = vld [vmem:[#allocation2 + $0xd8] sm:$0xff]
    %v79 = vld [vmem:[#allocation2 + $0xe0] sm:$0xff]
    %v80 = vld [vmem:[#allocation2 + $0xe8] sm:$0xff]
    %v81 = vld [vmem:[#allocation2 + $0xf0] sm:$0xff]
    %v82 = vld [vmem:[#allocation2 + $0xf8] sm:$0xff]
    %v83 = vld [vmem:[#allocation2 + $0x100] sm:$0xff]
    %v84 = vld [vmem:[#allocation2 + $0x108] sm:$0xff]
    %v85 = vld [vmem:[#allocation2 + $0x110] sm:$0xff]
    %v86 = vld [vmem:[#allocation2 + $0x118] sm:$0xff]
    %v87 = vld [vmem:[#allocation2 + $0x120] sm:$0xff]
    %v88 = vld [vmem:[#allocation2 + $0x128] sm:$0xff]
    %v89 = vld [vmem:[#allocation2 + $0x130] sm:$0xff]
    %v90 = vld [vmem:[#allocation2 + $0x138] sm:$0xff]
    %v91 = vld [vmem:[#allocation2 + $0x140] sm:$0xff]
    %v92 = vld [vmem:[#allocation2 + $0x148] sm:$0xff]
    %v93 = vld [vmem:[#allocation2 + $0x150] sm:$0xff]
    %v94 = vld [vmem:[#allocation2 + $0x158] sm:$0xff]
    %v95 = vld [vmem:[#allocation2 + $0x160] sm:$0xff]
    %v96 = vld [vmem:[#allocation2 + $0x168] sm:$0xff]
    %v97 = vld [vmem:[#allocation2 + $0x170] sm:$0xff]
    %v98 = vld [vmem:[#allocation2 + $0x178] sm:$0xff]
    %v99 = vld [vmem:[#allocation2 + $0x180] sm:$0xff]
    %v100 = vld [vmem:[#allocation2 + $0x188] sm:$0xff]
    %v101 = vld [vmem:[#allocation2 + $0x190] sm:$0xff]
    %v102 = vld [vmem:[#allocation2 + $0x198] sm:$0xff]
    %v103 = vld [vmem:[#allocation2 + $0x1a0] sm:$0xff]
    %v104 = vld [vmem:[#allocation2 + $0x1a8] sm:$0xff]
    %v105 = vld [vmem:[#allocation2 + $0x1b0] sm:$0xff]
    %v106 = vld [vmem:[#allocation2 + $0x1b8] sm:$0xff]
    %v107 = vld [vmem:[#allocation2 + $0x1c0] sm:$0xff]
    %v108 = vld [vmem:[#allocation2 + $0x1c8] sm:$0xff]
    %v109 = vld [vmem:[#allocation2 + $0x1d0] sm:$0xff]
    %v110 = vld [vmem:[#allocation2 + $0x1d8] sm:$0xff]
    %v111 = vld [vmem:[#allocation2 + $0x1e0] sm:$0xff]
    %v112 = vld [vmem:[#allocation2 + $0x1e8] sm:$0xff]
    %v113 = vld [vmem:[#allocation2 + $0x1f0] sm:$0xff]
    %v114 = vld [vmem:[#allocation2 + $0x1f8] sm:$0xff]
    %v115 = vld [vmem:[#allocation2 + $0x200] sm:$0xff]
    %v116 = vld [vmem:[#allocation2 + $0x208] sm:$0xff]
    %v117 = vld [vmem:[#allocation2 + $0x210] sm:$0xff]
    %v118 = vld [vmem:[#allocation2 + $0x218] sm:$0xff]
    %v119 = vld [vmem:[#allocation2 + $0x220] sm:$0xff]
    %v120 = vld [vmem:[#allocation2 + $0x228] sm:$0xff]
    %v121 = vld [vmem:[#allocation2 + $0x230] sm:$0xff]
    %v122 = vld [vmem:[#allocation2 + $0x238] sm:$0xff]
    %v123 = vld [vmem:[#allocation2 + $0x240] sm:$0xff]
    %v124 = vld [vmem:[#allocation2 + $0x248] sm:$0xff]
    %v125 = vld [vmem:[#allocation2 + $0x250] sm:$0xff]
    %v126 = vld [vmem:[#allocation2 + $0x258] sm:$0xff]
    %v127 = vld [vmem:[#allocation2 + $0x260] sm:$0xff]
    %v128 = vld [vmem:[#allocation2 + $0x268] sm:$0xff]
    %v129 = vld [vmem:[#allocation2 + $0x270] sm:$0xff]
    %v130 = vld [vmem:[#allocation2 + $0x278] sm:$0xff]
    %v131 = vld [vmem:[%s2] sm:$0x3]
    %v133 = vlaneseq
    %v134 = vshrl.u32 %v133, 7
    %v135 = vsub.s32 0, %v134
    %v136 = vrot.slane %v131, %v135
    %v137 = vlaneseq
    %v138 = vshrl.u32 %v137, 7
    %v139 = vsub.s32 1, %v138
    %v140 = vrot.slane %v131, %v139
    %v155 = vunpack.c.l.b16 %v39
    %v156 = vunpack.c.h.b16 %v39
    %v157 = vunpack.c.l.b16 %v40
    %v158 = vunpack.c.h.b16 %v40
    %v159 = vunpack.c.l.b16 %v41
    %v160 = vunpack.c.l.b16 %v42
    %v161 = vunpack.c.h.b16 %v42
    %v162 = vunpack.c.l.b16 %v43
    %v163 = vunpack.c.h.b16 %v43
    %v164 = vunpack.c.l.b16 %v44
    %v165 = vunpack.c.l.b16 %v45
    %v166 = vunpack.c.h.b16 %v45
    %v167 = vunpack.c.l.b16 %v46
    %v168 = vunpack.c.h.b16 %v46
    %v169 = vunpack.c.l.b16 %v47
    %v170 = vunpack.c.l.b16 %v48
    %v171 = vunpack.c.h.b16 %v48
    %v172 = vunpack.c.l.b16 %v49
    %v173 = vunpack.c.h.b16 %v49
    %v174 = vunpack.c.l.b16 %v50
    %v175 = vpack.c.b16 %v160, %v155
    %v176 = vpack.c.b16 %v161, %v156
    %v177 = vpack.c.b16 %v162, %v157
    %v178 = vpack.c.b16 %v163, %v158
    %v179 = vpack.c.b16 %v164, %v159
    %v180 = vpack.c.b16 %v170, %v165
    %v181 = vpack.c.b16 %v171, %v166
    %v182 = vpack.c.b16 %v172, %v167
    %v183 = vpack.c.b16 %v173, %v168
    %v184 = vpack.c.b16 %v174, %v169
    %v275 = vunpack.c.l.b16 %v51
    %v276 = vunpack.c.h.b16 %v51
    %v277 = vunpack.c.l.b16 %v52
    %v278 = vunpack.c.h.b16 %v52
    %v279 = vunpack.c.l.b16 %v53
    %v280 = vunpack.c.h.b16 %v53
    %v281 = vunpack.c.l.b16 %v54
    %v282 = vunpack.c.h.b16 %v54
    %v283 = vunpack.c.l.b16 %v55
    %v284 = vunpack.c.h.b16 %v55
    %v285 = vunpack.c.l.b16 %v56
    %v286 = vunpack.c.h.b16 %v56
    %v287 = vunpack.c.l.b16 %v57
    %v288 = vunpack.c.h.b16 %v57
    %v289 = vunpack.c.l.b16 %v58
    %v290 = vunpack.c.h.b16 %v58
    %v291 = vunpack.c.l.b16 %v59
    %v292 = vunpack.c.h.b16 %v59
    %v293 = vunpack.c.l.b16 %v60
    %v294 = vunpack.c.h.b16 %v60
    %v295 = vunpack.c.l.b16 %v61
    %v296 = vunpack.c.h.b16 %v61
    %v297 = vunpack.c.l.b16 %v62
    %v298 = vunpack.c.h.b16 %v62
    %v299 = vunpack.c.l.b16 %v63
    %v300 = vunpack.c.h.b16 %v63
    %v301 = vunpack.c.l.b16 %v64
    %v302 = vunpack.c.h.b16 %v64
    %v303 = vunpack.c.l.b16 %v65
    %v304 = vunpack.c.h.b16 %v65
    %v305 = vunpack.c.l.b16 %v66
    %v306 = vunpack.c.h.b16 %v66
    %v307 = vunpack.c.l.b16 %v67
    %v308 = vunpack.c.h.b16 %v67
    %v309 = vunpack.c.l.b16 %v68
    %v310 = vunpack.c.h.b16 %v68
    %v311 = vunpack.c.l.b16 %v69
    %v312 = vunpack.c.h.b16 %v69
    %v313 = vunpack.c.l.b16 %v70
    %v314 = vunpack.c.h.b16 %v70
    %v315 = vunpack.c.l.b16 %v71
    %v316 = vunpack.c.h.b16 %v71
    %v317 = vunpack.c.l.b16 %v72
    %v318 = vunpack.c.h.b16 %v72
    %v319 = vunpack.c.l.b16 %v73
    %v320 = vunpack.c.h.b16 %v73
    %v321 = vunpack.c.l.b16 %v74
    %v322 = vunpack.c.h.b16 %v74
    %v323 = vunpack.c.l.b16 %v75
    %v324 = vunpack.c.h.b16 %v75
    %v325 = vunpack.c.l.b16 %v76
    %v326 = vunpack.c.h.b16 %v76
    %v327 = vunpack.c.l.b16 %v77
    %v328 = vunpack.c.h.b16 %v77
    %v329 = vunpack.c.l.b16 %v78
    %v330 = vunpack.c.h.b16 %v78
    %v331 = vunpack.c.l.b16 %v79
    %v332 = vunpack.c.h.b16 %v79
    %v333 = vunpack.c.l.b16 %v80
    %v334 = vunpack.c.h.b16 %v80
    %v335 = vunpack.c.l.b16 %v81
    %v336 = vunpack.c.h.b16 %v81
    %v337 = vunpack.c.l.b16 %v82
    %v338 = vunpack.c.h.b16 %v82
    %v339 = vunpack.c.l.b16 %v83
    %v340 = vunpack.c.h.b16 %v83
    %v341 = vunpack.c.l.b16 %v84
    %v342 = vunpack.c.h.b16 %v84
    %v343 = vunpack.c.l.b16 %v85
    %v344 = vunpack.c.h.b16 %v85
    %v345 = vunpack.c.l.b16 %v86
    %v346 = vunpack.c.h.b16 %v86
    %v347 = vunpack.c.l.b16 %v87
    %v348 = vunpack.c.h.b16 %v87
    %v349 = vunpack.c.l.b16 %v88
    %v350 = vunpack.c.h.b16 %v88
    %v351 = vunpack.c.l.b16 %v89
    %v352 = vunpack.c.h.b16 %v89
    %v353 = vunpack.c.l.b16 %v90
    %v354 = vunpack.c.h.b16 %v90
    %v355 = vunpack.c.l.b16 %v91
    %v356 = vunpack.c.h.b16 %v91
    %v357 = vunpack.c.l.b16 %v92
    %v358 = vunpack.c.h.b16 %v92
    %v359 = vunpack.c.l.b16 %v93
    %v360 = vunpack.c.h.b16 %v93
    %v361 = vunpack.c.l.b16 %v94
    %v362 = vunpack.c.h.b16 %v94
    %v363 = vunpack.c.l.b16 %v95
    %v364 = vunpack.c.h.b16 %v95
    %v365 = vunpack.c.l.b16 %v96
    %v366 = vunpack.c.h.b16 %v96
    %v367 = vunpack.c.l.b16 %v97
    %v368 = vunpack.c.h.b16 %v97
    %v369 = vunpack.c.l.b16 %v98
    %v370 = vunpack.c.h.b16 %v98
    %v371 = vunpack.c.l.b16 %v99
    %v372 = vunpack.c.h.b16 %v99
    %v373 = vunpack.c.l.b16 %v100
    %v374 = vunpack.c.h.b16 %v100
    %v375 = vunpack.c.l.b16 %v101
    %v376 = vunpack.c.h.b16 %v101
    %v377 = vunpack.c.l.b16 %v102
    %v378 = vunpack.c.h.b16 %v102
    %v379 = vunpack.c.l.b16 %v103
    %v380 = vunpack.c.h.b16 %v103
    %v381 = vunpack.c.l.b16 %v104
    %v382 = vunpack.c.h.b16 %v104
    %v383 = vunpack.c.l.b16 %v105
    %v384 = vunpack.c.h.b16 %v105
    %v385 = vunpack.c.l.b16 %v106
    %v386 = vunpack.c.h.b16 %v106
    %v387 = vunpack.c.l.b16 %v107
    %v388 = vunpack.c.h.b16 %v107
    %v389 = vunpack.c.l.b16 %v108
    %v390 = vunpack.c.h.b16 %v108
    %v391 = vunpack.c.l.b16 %v109
    %v392 = vunpack.c.h.b16 %v109
    %v393 = vunpack.c.l.b16 %v110
    %v394 = vunpack.c.h.b16 %v110
    %v395 = vunpack.c.l.b16 %v111
    %v396 = vunpack.c.h.b16 %v111
    %v397 = vunpack.c.l.b16 %v112
    %v398 = vunpack.c.h.b16 %v112
    %v399 = vunpack.c.l.b16 %v113
    %v400 = vunpack.c.h.b16 %v113
    %v401 = vunpack.c.l.b16 %v114
    %v402 = vunpack.c.h.b16 %v114
    %v403 = vunpack.c.l.b16 %v115
    %v404 = vunpack.c.h.b16 %v115
    %v405 = vunpack.c.l.b16 %v116
    %v406 = vunpack.c.h.b16 %v116
    %v407 = vunpack.c.l.b16 %v117
    %v408 = vunpack.c.h.b16 %v117
    %v409 = vunpack.c.l.b16 %v118
    %v410 = vunpack.c.h.b16 %v118
    %v411 = vunpack.c.l.b16 %v119
    %v412 = vunpack.c.h.b16 %v119
    %v413 = vunpack.c.l.b16 %v120
    %v414 = vunpack.c.h.b16 %v120
    %v415 = vunpack.c.l.b16 %v121
    %v416 = vunpack.c.h.b16 %v121
    %v417 = vunpack.c.l.b16 %v122
    %v418 = vunpack.c.h.b16 %v122
    %v419 = vunpack.c.l.b16 %v123
    %v420 = vunpack.c.h.b16 %v123
    %v421 = vunpack.c.l.b16 %v124
    %v422 = vunpack.c.h.b16 %v124
    %v423 = vunpack.c.l.b16 %v125
    %v424 = vunpack.c.h.b16 %v125
    %v425 = vunpack.c.l.b16 %v126
    %v426 = vunpack.c.h.b16 %v126
    %v427 = vunpack.c.l.b16 %v127
    %v428 = vunpack.c.h.b16 %v127
    %v429 = vunpack.c.l.b16 %v128
    %v430 = vunpack.c.h.b16 %v128
    %v431 = vunpack.c.l.b16 %v129
    %v432 = vunpack.c.h.b16 %v129
    %v433 = vunpack.c.l.b16 %v130
    %v434 = vunpack.c.h.b16 %v130
    %v435 = vpack.c.b16 %v277, %v275
    %v436 = vpack.c.b16 %v278, %v276
    %v437 = vpack.c.b16 %v281, %v279
    %v438 = vpack.c.b16 %v282, %v280
    %v439 = vpack.c.b16 %v285, %v283
    %v440 = vpack.c.b16 %v286, %v284
    %v441 = vpack.c.b16 %v289, %v287
    %v442 = vpack.c.b16 %v290, %v288
    %v443 = vpack.c.b16 %v293, %v291
    %v444 = vpack.c.b16 %v294, %v292
    %v445 = vpack.c.b16 %v297, %v295
    %v446 = vpack.c.b16 %v298, %v296
    %v447 = vpack.c.b16 %v301, %v299
    %v448 = vpack.c.b16 %v302, %v300
    %v449 = vpack.c.b16 %v305, %v303
    %v450 = vpack.c.b16 %v306, %v304
    %v451 = vpack.c.b16 %v309, %v307
    %v452 = vpack.c.b16 %v310, %v308
    %v453 = vpack.c.b16 %v313, %v311
    %v454 = vpack.c.b16 %v314, %v312
    %v455 = vpack.c.b16 %v317, %v315
    %v456 = vpack.c.b16 %v318, %v316
    %v457 = vpack.c.b16 %v321, %v319
    %v458 = vpack.c.b16 %v322, %v320
    %v459 = vpack.c.b16 %v325, %v323
    %v460 = vpack.c.b16 %v326, %v324
    %v461 = vpack.c.b16 %v329, %v327
    %v462 = vpack.c.b16 %v330, %v328
    %v463 = vpack.c.b16 %v333, %v331
    %v464 = vpack.c.b16 %v334, %v332
    %v465 = vpack.c.b16 %v337, %v335
    %v466 = vpack.c.b16 %v338, %v336
    %v467 = vpack.c.b16 %v341, %v339
    %v468 = vpack.c.b16 %v342, %v340
    %v469 = vpack.c.b16 %v345, %v343
    %v470 = vpack.c.b16 %v346, %v344
    %v471 = vpack.c.b16 %v349, %v347
    %v472 = vpack.c.b16 %v350, %v348
    %v473 = vpack.c.b16 %v353, %v351
    %v474 = vpack.c.b16 %v354, %v352
    %v475 = vpack.c.b16 %v357, %v355
    %v476 = vpack.c.b16 %v358, %v356
    %v477 = vpack.c.b16 %v361, %v359
    %v478 = vpack.c.b16 %v362, %v360
    %v479 = vpack.c.b16 %v365, %v363
    %v480 = vpack.c.b16 %v366, %v364
    %v481 = vpack.c.b16 %v369, %v367
    %v482 = vpack.c.b16 %v370, %v368
    %v483 = vpack.c.b16 %v373, %v371
    %v484 = vpack.c.b16 %v374, %v372
    %v485 = vpack.c.b16 %v377, %v375
    %v486 = vpack.c.b16 %v378, %v376
    %v487 = vpack.c.b16 %v381, %v379
    %v488 = vpack.c.b16 %v382, %v380
    %v489 = vpack.c.b16 %v385, %v383
    %v490 = vpack.c.b16 %v386, %v384
    %v491 = vpack.c.b16 %v389, %v387
    %v492 = vpack.c.b16 %v390, %v388
    %v493 = vpack.c.b16 %v393, %v391
    %v494 = vpack.c.b16 %v394, %v392
    %v495 = vpack.c.b16 %v397, %v395
    %v496 = vpack.c.b16 %v398, %v396
    %v497 = vpack.c.b16 %v401, %v399
    %v498 = vpack.c.b16 %v402, %v400
    %v499 = vpack.c.b16 %v405, %v403
    %v500 = vpack.c.b16 %v406, %v404
    %v501 = vpack.c.b16 %v409, %v407
    %v502 = vpack.c.b16 %v410, %v408
    %v503 = vpack.c.b16 %v413, %v411
    %v504 = vpack.c.b16 %v414, %v412
    %v505 = vpack.c.b16 %v417, %v415
    %v506 = vpack.c.b16 %v418, %v416
    %v507 = vpack.c.b16 %v421, %v419
    %v508 = vpack.c.b16 %v422, %v420
    %v509 = vpack.c.b16 %v425, %v423
    %v510 = vpack.c.b16 %v426, %v424
    %v511 = vpack.c.b16 %v429, %v427
    %v512 = vpack.c.b16 %v430, %v428
    %v513 = vpack.c.b16 %v433, %v431
    %v514 = vpack.c.b16 %v434, %v432
    %595 = vmatprep.subr.bf16.mxu0 %v436
    %596 = vmatpush1.bf16.msra.mxu0 %v435
    %597 = vmatprep.subr.bf16.mxu0 %v438
    %598 = vmatpush1.bf16.msra.mxu0 %v437
    %599 = vmatprep.subr.bf16.mxu0 %v440
    %600 = vmatpush1.bf16.msra.mxu0 %v439
    %601 = vmatprep.subr.bf16.mxu0 %v442
    %602 = vmatpush1.bf16.msra.mxu0 %v441
    %603 = vmatprep.subr.bf16.mxu0 %v444
    %604 = vmatpush1.bf16.msra.mxu0 %v443
    %605 = vmatprep.subr.bf16.mxu0 %v446
    %606 = vmatpush1.bf16.msra.mxu0 %v445
    %607 = vmatprep.subr.bf16.mxu0 %v448
    %608 = vmatpush1.bf16.msra.mxu0 %v447
    %609 = vmatprep.subr.bf16.mxu0 %v450
    %610 = vmatpush1.bf16.msra.mxu0 %v449
    %611 = vmatprep.subr.bf16.mxu0 %v452
    %612 = vmatpush1.bf16.msra.mxu0 %v451
    %613 = vmatprep.subr.bf16.mxu0 %v454
    %614 = vmatpush1.bf16.msra.mxu0 %v453
    %615 = vmatprep.subr.bf16.mxu0 %v456
    %616 = vmatpush1.bf16.msra.mxu0 %v455
    %617 = vmatprep.subr.bf16.mxu0 %v458
    %618 = vmatpush1.bf16.msra.mxu0 %v457
    %619 = vmatprep.subr.bf16.mxu0 %v460
    %620 = vmatpush1.bf16.msra.mxu0 %v459
    %621 = vmatprep.subr.bf16.mxu0 %v462
    %622 = vmatpush1.bf16.msra.mxu0 %v461
    %623 = vmatprep.subr.bf16.mxu0 %v464
    %624 = vmatpush1.bf16.msra.mxu0 %v463
    %625 = vmatprep.subr.bf16.mxu0 %v466
    %626 = vmatpush1.bf16.msra.mxu0 %v465
    %627 = vmatprep.mubr.bf16.mxu0 %v176
    %628 = vmatmul.mubr.bf16.gmra.mrb[0].mxu0 %v175
    %v629 = vpop.f32.mrb[0].mxu0
    %v630 = vadd.f32 %v136, %v629
    %v631 = vpop.f32.mrb[0].mxu0
    %v632 = vadd.f32 %v140, %v631
    %v633 = vpop.f32.mrb[0].mxu0
    %v634 = vadd.f32 %v136, %v633
    %v635 = vpop.f32.mrb[0].mxu0
    %v636 = vadd.f32 %v140, %v635
    %637 = vmatprep.mubr.bf16.mxu0 %v181
    %638 = vmatmul.mubr.bf16.gmra.mrb[0].mxu0 %v180
    %v639 = vpop.f32.mrb[0].mxu0
    %v640 = vadd.f32 %v136, %v639
    %v641 = vpop.f32.mrb[0].mxu0
    %v642 = vadd.f32 %v140, %v641
    %v643 = vpop.f32.mrb[0].mxu0
    %v644 = vadd.f32 %v136, %v643
    %v645 = vpop.f32.mrb[0].mxu0
    %v646 = vadd.f32 %v140, %v645
    %647 = vdwg.mxu0
    %648 = vmatprep.subr.bf16.mxu0 %v468
    %649 = vmatpush1.bf16.msra.mxu0 %v467
    %650 = vmatprep.subr.bf16.mxu0 %v470
    %651 = vmatpush1.bf16.msra.mxu0 %v469
    %652 = vmatprep.subr.bf16.mxu0 %v472
    %653 = vmatpush1.bf16.msra.mxu0 %v471
    %654 = vmatprep.subr.bf16.mxu0 %v474
    %655 = vmatpush1.bf16.msra.mxu0 %v473
    %656 = vmatprep.subr.bf16.mxu0 %v476
    %657 = vmatpush1.bf16.msra.mxu0 %v475
    %658 = vmatprep.subr.bf16.mxu0 %v478
    %659 = vmatpush1.bf16.msra.mxu0 %v477
    %660 = vmatprep.subr.bf16.mxu0 %v480
    %661 = vmatpush1.bf16.msra.mxu0 %v479
    %662 = vmatprep.subr.bf16.mxu0 %v482
    %663 = vmatpush1.bf16.msra.mxu0 %v481
    %664 = vmatprep.subr.bf16.mxu0 %v484
    %665 = vmatpush1.bf16.msra.mxu0 %v483
    %666 = vmatprep.subr.bf16.mxu0 %v486
    %667 = vmatpush1.bf16.msra.mxu0 %v485
    %668 = vmatprep.subr.bf16.mxu0 %v488
    %669 = vmatpush1.bf16.msra.mxu0 %v487
    %670 = vmatprep.subr.bf16.mxu0 %v490
    %671 = vmatpush1.bf16.msra.mxu0 %v489
    %672 = vmatprep.subr.bf16.mxu0 %v492
    %673 = vmatpush1.bf16.msra.mxu0 %v491
    %674 = vmatprep.subr.bf16.mxu0 %v494
    %675 = vmatpush1.bf16.msra.mxu0 %v493
    %676 = vmatprep.subr.bf16.mxu0 %v496
    %677 = vmatpush1.bf16.msra.mxu0 %v495
    %678 = vmatprep.subr.bf16.mxu0 %v498
    %679 = vmatpush1.bf16.msra.mxu0 %v497
    %680 = vmatprep.mubr.bf16.mxu0 %v178
    %681 = vmatmul.mubr.bf16.gmra.mrb[0].mxu0 %v177
    %v682 = vpop.f32.mrb[0].mxu0
    %v683 = vadd.f32 %v630, %v682
    %v684 = vpop.f32.mrb[0].mxu0
    %v685 = vadd.f32 %v632, %v684
    %v686 = vpop.f32.mrb[0].mxu0
    %v687 = vadd.f32 %v634, %v686
    %v688 = vpop.f32.mrb[0].mxu0
    %v689 = vadd.f32 %v636, %v688
    %690 = vmatprep.mubr.bf16.mxu0 %v183
    %691 = vmatmul.mubr.bf16.gmra.mrb[0].mxu0 %v182
    %v692 = vpop.f32.mrb[0].mxu0
    %v693 = vadd.f32 %v640, %v692
    %v694 = vpop.f32.mrb[0].mxu0
    %v695 = vadd.f32 %v642, %v694
    %v696 = vpop.f32.mrb[0].mxu0
    %v697 = vadd.f32 %v644, %v696
    %v698 = vpop.f32.mrb[0].mxu0
    %v699 = vadd.f32 %v646, %v698
    %700 = vdwg.mxu0
    %701 = vmatprep.subr.bf16.mxu0 %v500
    %702 = vmatpush1.bf16.msra.mxu0 %v499
    %703 = vmatprep.subr.bf16.mxu0 %v502
    %704 = vmatpush1.bf16.msra.mxu0 %v501
    %705 = vmatprep.subr.bf16.mxu0 %v504
    %706 = vmatpush1.bf16.msra.mxu0 %v503
    %707 = vmatprep.subr.bf16.mxu0 %v506
    %708 = vmatpush1.bf16.msra.mxu0 %v505
    %709 = vmatprep.subr.bf16.mxu0 %v508
    %710 = vmatpush1.bf16.msra.mxu0 %v507
    %711 = vmatprep.subr.bf16.mxu0 %v510
    %712 = vmatpush1.bf16.msra.mxu0 %v509
    %713 = vmatprep.subr.bf16.mxu0 %v512
    %714 = vmatpush1.bf16.msra.mxu0 %v511
    %715 = vmatprep.subr.bf16.mxu0 %v514
    %716 = vmatpush1.bf16.msra.mxu0 %v513
    %717 = vmatprep.subr.bf16.mxu0 0
    %718 = vmatpush1.bf16.msra.mxu0 0
    %719 = vmatprep.subr.bf16.mxu0 0
    %720 = vmatpush1.bf16.msra.mxu0 0
    %721 = vmatprep.subr.bf16.mxu0 0
    %722 = vmatpush1.bf16.msra.mxu0 0
    %723 = vmatprep.subr.bf16.mxu0 0
    %724 = vmatpush1.bf16.msra.mxu0 0
    %725 = vmatprep.subr.bf16.mxu0 0
    %726 = vmatpush1.bf16.msra.mxu0 0
    %727 = vmatprep.subr.bf16.mxu0 0
    %728 = vmatpush1.bf16.msra.mxu0 0
    %729 = vmatprep.subr.bf16.mxu0 0
    %730 = vmatpush1.bf16.msra.mxu0 0
    %731 = vmatprep.subr.bf16.mxu0 0
    %732 = vmatpush1.bf16.msra.mxu0 0
    %733 = vmatprep.mubr.bf16.mxu0 0
    %734 = vmatmul.mubr.bf16.gmra.mrb[0].mxu0 %v179
    %v735 = vpop.f32.mrb[0].mxu0
    %v736 = vadd.f32 %v683, %v735
    %v737 = vpop.f32.mrb[0].mxu0
    %v738 = vadd.f32 %v685, %v737
    %v739 = vpop.f32.mrb[0].mxu0
    %v740 = vadd.f32 %v687, %v739
    %v741 = vpop.f32.mrb[0].mxu0
    %v742 = vadd.f32 %v689, %v741
    %743 = vmatprep.mubr.bf16.mxu0 0
    %744 = vmatmul.mubr.bf16.gmra.mrb[0].mxu0 %v184
    %v745 = vpop.f32.mrb[0].mxu0
    %v746 = vadd.f32 %v693, %v745
    %v747 = vpop.f32.mrb[0].mxu0
    %v748 = vadd.f32 %v695, %v747
    %v749 = vpop.f32.mrb[0].mxu0
    %v750 = vadd.f32 %v697, %v749
    %v751 = vpop.f32.mrb[0].mxu0
    %v752 = vadd.f32 %v699, %v751
    %753 = vdwg.mxu0
    %v754 = vmax.f32 %v736, 0.0
    %v755 = vmax.f32 %v738, 0.0
    %v756 = vmax.f32 %v740, 0.0
    %v757 = vmax.f32 %v742, 0.0
    %v758 = vmax.f32 %v746, 0.0
    %v759 = vmax.f32 %v748, 0.0
    %v760 = vmax.f32 %v750, 0.0
    %v761 = vmax.f32 %v752, 0.0
    %v762 = vld [vmem:[%s3] sm:$0xff]
    %v763 = vld [vmem:[%s3 + $0x8] sm:$0xff]
    %v764 = vld [vmem:[%s3 + $0x10] sm:$0xff]
    %v765 = vld [vmem:[%s3 + $0x18] sm:$0xff]
    %v766 = vmul.f32 %v754, %v762
    %v767 = vmul.f32 %v755, %v763
    %v768 = vmul.f32 %v756, %v764
    %v769 = vmul.f32 %v757, %v765
    %v770 = vmul.f32 %v758, %v762
    %v771 = vmul.f32 %v759, %v763
    %v772 = vmul.f32 %v760, %v764
    %v773 = vmul.f32 %v761, %v765
    %v774 = vmax.f32 %v766, %v768
    %v775 = vrot.slane %v774, 4
    %v776 = vmax.f32 %v774, %v775
    %v777 = vrot.slane %v776, 2
    %v778 = vmax.f32 %v776, %v777
    %v779 = vrot.slane %v778, 1
    %v780 = vmax.f32 %v778, %v779
    %v781 = vmax.f32 %v767, %v769
    %v782 = vrot.slane %v781, 4
    %v783 = vmax.f32 %v781, %v782
    %v784 = vrot.slane %v783, 2
    %v785 = vmax.f32 %v783, %v784
    %v786 = vrot.slane %v785, 1
    %v787 = vmax.f32 %v785, %v786
    %v788 = vmax.f32 %v770, %v772
    %v789 = vrot.slane %v788, 4
    %v790 = vmax.f32 %v788, %v789
    %v791 = vrot.slane %v790, 2
    %v792 = vmax.f32 %v790, %v791
    %v793 = vrot.slane %v792, 1
    %v794 = vmax.f32 %v792, %v793
    %v795 = vmax.f32 %v771, %v773
    %v796 = vrot.slane %v795, 4
    %v797 = vmax.f32 %v795, %v796
    %v798 = vrot.slane %v797, 2
    %v799 = vmax.f32 %v797, %v798
    %v800 = vrot.slane %v799, 1
    %v801 = vmax.f32 %v799, %v800
    %v802 = vpack.c.bf16 %v780, %v780
    %v803 = vpack.c.bf16 %v787, %v787
    %v804 = vpack.c.bf16 %v794, %v794
    %v805 = vpack.c.bf16 %v801, %v801
    %v806 = vld [vmem:[%s4] sm:$0xf]
    %v807 = vld [vmem:[%s4 + $0x4] sm:$0xf]
    %v808 = vld [vmem:[%s4 + $0x8] sm:$0xf]
    %v809 = vld [vmem:[%s4 + $0xc] sm:$0xf]
    %v810 = vld [vmem:[%s4 + $0x10] sm:$0xf]
    %v811 = vld [vmem:[%s4 + $0x14] sm:$0xf]
    %v812 = vld [vmem:[%s4 + $0x18] sm:$0xf]
    %v813 = vld [vmem:[%s4 + $0x1c] sm:$0xf]
    %v814 = vld [vmem:[%s4 + $0x20] sm:$0xf]
    %v815 = vld [vmem:[%s4 + $0x24] sm:$0xf]
    %v816 = vld [vmem:[%s4 + $0x28] sm:$0xf]
    %v817 = vld [vmem:[%s4 + $0x2c] sm:$0xf]
    %v818 = vld [vmem:[%s4 + $0x30] sm:$0xf]
    %v819 = vld [vmem:[%s4 + $0x34] sm:$0xf]
    %v820 = vld [vmem:[%s4 + $0x38] sm:$0xf]
    %v821 = vld [vmem:[%s4 + $0x3c] sm:$0xf]
    %v822 = vld [vmem:[%s4 + $0x40] sm:$0xf]
    %v823 = vld [vmem:[%s4 + $0x44] sm:$0xf]
    %v824 = vld [vmem:[%s4 + $0x48] sm:$0xf]
    %v825 = vld [vmem:[%s4 + $0x4c] sm:$0xf]
    %v826 = vld [vmem:[%s4 + $0x50] sm:$0xf]
    %v827 = vld [vmem:[%s4 + $0x54] sm:$0xf]
    %v828 = vld [vmem:[%s4 + $0x58] sm:$0xf]
    %v829 = vld [vmem:[%s4 + $0x5c] sm:$0xf]
    %v830 = vld [vmem:[%s4 + $0x60] sm:$0xf]
    %v831 = vld [vmem:[%s4 + $0x64] sm:$0xf]
    %v832 = vld [vmem:[%s4 + $0x68] sm:$0xf]
    %v833 = vld [vmem:[%s4 + $0x6c] sm:$0xf]
    %v834 = vld [vmem:[%s4 + $0x70] sm:$0xf]
    %v835 = vld [vmem:[%s4 + $0x74] sm:$0xf]
    %v836 = vld [vmem:[%s4 + $0x78] sm:$0xf]
    %v837 = vld [vmem:[%s4 + $0x7c] sm:$0xf]
    %v838 = vld [vmem:[%s5] sm:$0x1]
    %v840 = vlaneseq
    %v841 = vshrl.u32 %v840, 7
    %v842 = vsub.s32 0, %v841
    %v843 = vrot.slane %v838, %v842
    %v849 = vunpack.c.l.b16 %v802
    %v850 = vunpack.c.l.b16 %v803
    %v851 = vunpack.c.l.b16 %v804
    %v852 = vunpack.c.l.b16 %v805
    %vm853 = vcmask 1041409
    %v854 = vsel %vm853, %v851, %v849
    %v855 = vsel %vm853, %v852, %v850
    %v856 = vpack.c.b16 %v854, %v854
    %v857 = vpack.c.b16 %v855, %v855
    %v892 = vunpack.c.l.b16 %v806
    %v893 = vunpack.c.l.b16 %v807
    %v894 = vunpack.c.l.b16 %v808
    %v895 = vunpack.c.l.b16 %v809
    %v896 = vunpack.c.l.b16 %v810
    %v897 = vunpack.c.l.b16 %v811
    %v898 = vunpack.c.l.b16 %v812
    %v899 = vunpack.c.l.b16 %v813
    %v900 = vunpack.c.l.b16 %v814
    %v901 = vunpack.c.l.b16 %v815
    %v902 = vunpack.c.l.b16 %v816
    %v903 = vunpack.c.l.b16 %v817
    %v904 = vunpack.c.l.b16 %v818
    %v905 = vunpack.c.l.b16 %v819
    %v906 = vunpack.c.l.b16 %v820
    %v907 = vunpack.c.l.b16 %v821
    %v908 = vunpack.c.l.b16 %v822
    %v909 = vunpack.c.l.b16 %v823
    %v910 = vunpack.c.l.b16 %v824
    %v911 = vunpack.c.l.b16 %v825
    %v912 = vunpack.c.l.b16 %v826
    %v913 = vunpack.c.l.b16 %v827
    %v914 = vunpack.c.l.b16 %v828
    %v915 = vunpack.c.l.b16 %v829
    %v916 = vunpack.c.l.b16 %v830
    %v917 = vunpack.c.l.b16 %v831
    %v918 = vunpack.c.l.b16 %v832
    %v919 = vunpack.c.l.b16 %v833
    %v920 = vunpack.c.l.b16 %v834
    %v921 = vunpack.c.l.b16 %v835
    %v922 = vunpack.c.l.b16 %v836
    %v923 = vunpack.c.l.b16 %v837
    %v924 = vpack.c.b16 %v893, %v892
    %v925 = vpack.c.b16 %v895, %v894
    %v926 = vpack.c.b16 %v897, %v896
    %v927 = vpack.c.b16 %v899, %v898
    %v928 = vpack.c.b16 %v901, %v900
    %v929 = vpack.c.b16 %v903, %v902
    %v930 = vpack.c.b16 %v905, %v904
    %v931 = vpack.c.b16 %v907, %v906
    %v932 = vpack.c.b16 %v909, %v908
    %v933 = vpack.c.b16 %v911, %v910
    %v934 = vpack.c.b16 %v913, %v912
    %v935 = vpack.c.b16 %v915, %v914
    %v936 = vpack.c.b16 %v917, %v916
    %v937 = vpack.c.b16 %v919, %v918
    %v938 = vpack.c.b16 %v921, %v920
    %v939 = vpack.c.b16 %v923, %v922
    %956 = vmatprep.subr.bf16.mxu0 0
    %957 = vmatpush1.bf16.msra.mxu0 %v924
    %958 = vmatprep.subr.bf16.mxu0 0
    %959 = vmatpush1.bf16.msra.mxu0 %v925
    %960 = vmatprep.subr.bf16.mxu0 0
    %961 = vmatpush1.bf16.msra.mxu0 %v926
    %962 = vmatprep.subr.bf16.mxu0 0
    %963 = vmatpush1.bf16.msra.mxu0 %v927
    %964 = vmatprep.subr.bf16.mxu0 0
    %965 = vmatpush1.bf16.msra.mxu0 %v928
    %966 = vmatprep.subr.bf16.mxu0 0
    %967 = vmatpush1.bf16.msra.mxu0 %v929
    %968 = vmatprep.subr.bf16.mxu0 0
    %969 = vmatpush1.bf16.msra.mxu0 %v930
    %970 = vmatprep.subr.bf16.mxu0 0
    %971 = vmatpush1.bf16.msra.mxu0 %v931
    %972 = vmatprep.subr.bf16.mxu0 0
    %973 = vmatpush1.bf16.msra.mxu0 %v932
    %974 = vmatprep.subr.bf16.mxu0 0
    %975 = vmatpush1.bf16.msra.mxu0 %v933
    %976 = vmatprep.subr.bf16.mxu0 0
    %977 = vmatpush1.bf16.msra.mxu0 %v934
    %978 = vmatprep.subr.bf16.mxu0 0
    %979 = vmatpush1.bf16.msra.mxu0 %v935
    %980 = vmatprep.subr.bf16.mxu0 0
    %981 = vmatpush1.bf16.msra.mxu0 %v936
    %982 = vmatprep.subr.bf16.mxu0 0
    %983 = vmatpush1.bf16.msra.mxu0 %v937
    %984 = vmatprep.subr.bf16.mxu0 0
    %985 = vmatpush1.bf16.msra.mxu0 %v938
    %986 = vmatprep.subr.bf16.mxu0 0
    %987 = vmatpush1.bf16.msra.mxu0 %v939
    %988 = vmatprep.mubr.bf16.mxu0 %v857
    %989 = vmatmul.mubr.bf16.gmra.mrb[0].mxu0 %v856
    %v990 = vpop.f32.mrb[0].mxu0
    %v991 = vadd.f32 %v843, %v990
    %v992 = vpop.f32.mrb[0].mxu0
    %v993 = vpop.f32.mrb[0].mxu0
    %v994 = vpop.f32.mrb[0].mxu0
    %995 = vdwg.mxu0
    %996 = vst [vmem:[#allocation5] sm:$0x3] %v991
    // Predicated region
    $region30: #{kimcnn_forward.1} parent=1 // pred_check
      _
    $region31: #{kimcnn_forward.1} parent=1 // pred_check_branch
      %998 = sbr.rel (0) target = $region33
    $region32: #{kimcnn_forward.1} parent=1 // pred_region
      %s1000 = ssub.s32 32, 32
      %1001 = vsyncadd [#allocation4], %s1000
      %s1003 = sshll.u32 [#allocation5], 4
      %s1004 = int_to_ptr.vmem [resolvable:$true] %s1003
      %1006 = dma.vmem_to_hbm [thread:$0]  %s1004, 32, %s6, [#allocation4]
    $region33: #{kimcnn_forward.1} parent=1 // pred_fallthru
      _
    // Predicated region
    $region34: #{kimcnn_forward.1} parent=1 // pred_check
      _
    $region35: #{kimcnn_forward.1} parent=1 // pred_check_branch
      %1008 = sbr.rel (0) target = $region37
    $region36: #{kimcnn_forward.1} parent=1 // pred_region
      %1009 = dma.done [#allocation4], 32
    $region37: #{kimcnn_forward.1} parent=1 // pred_fallthru
      _
    %1010 = vsyncpa [#allocation3], 1
    %1011 = vsyncpa [#allocation4], 1

</llo_original>
